<compile_context>
chip_gen: v5e
topology: v5e:2x2
jax: 0.10.0
libtpu: 0.0.40
codegen_flags: <defaults>
</compile_context>

<pallas_src>
import functools

import jax
import jax.numpy as jnp
from jax.experimental import pallas as pl
from jax.experimental.pallas import tpu as pltpu

_LANES = 128


def _round_up(x: int, m: int) -> int:
    return ((x + m - 1) // m) * m


def _sublanes_for(dtype) -> int:
    # Sub-32-bit dtypes pack along sublanes: 8 rows/vreg f32, 16 bf16, 32 int8.
    return {4: 8, 2: 16, 1: 32}.get(jnp.dtype(dtype).itemsize, 8)


def _pick_block_config():
    """Per-TPU-generation (block_bytes, vmem_limit_bytes)."""
    try:
        kind = jax.devices()[0].device_kind.lower()
    except Exception:
        kind = ""
    if "v5" in kind:
        # ~0.8 TB/s HBM: a 2 MiB step is ~5 us vs ~0.35 us overhead (<10%).
        return 2 * 1024 * 1024, 32 * 1024 * 1024
    if "7" in kind:
        # v7x: ~3.2 TB/s HBM, 64 MiB/TC VMEM -> larger blocks to hide the
        # fixed per-grid-step overhead; 4 x 8 MiB buffers fit under 48 MiB.
        return 8 * 1024 * 1024, 48 * 1024 * 1024
    # v6e (and unknown): 4 MiB blocks, 4 x 4 MiB buffers.
    return 4 * 1024 * 1024, 40 * 1024 * 1024


def _drop_path_kernel(keep_ref, x_ref, o_ref, *, scale):
    # keep_ref: (B,) int32 scalar-prefetch array in SMEM.
    # x_ref / o_ref: (1, TR, 128) lane-dense feature slab of one sample.
    b = pl.program_id(0)
    kept = keep_ref[b] != 0

    @pl.when(kept)
    def _():
        o_ref[...] = x_ref[...] * jnp.array(scale, dtype=o_ref.dtype)

    @pl.when(jnp.logical_not(kept))
    def _():
        o_ref[...] = jnp.zeros_like(o_ref)


def drop_path_pallas(x, drop_prob: float = 0.0, training: bool = False,
                     scale_by_keep: bool = True, *, key=None,
                     donate: bool = False):
    """Pallas implementation of drop_path (stochastic depth, per-sample)."""
    if drop_prob == 0.0 or not training:
        return x
    if x.size == 0:
        return x
    if key is None:
        raise ValueError(
            "drop_path_pallas requires an explicit jax.random key in training "
            "mode (PyTorch draws from the global RNG each forward).")

    keep_prob = 1.0 - drop_prob
    orig_shape = x.shape
    dtype = x.dtype
    B = orig_shape[0]

    # Per-sample keep flags (tiny) computed once outside the kernel; int32 so
    # they can live in SMEM via scalar prefetch.
    keep = jax.random.bernoulli(key, p=keep_prob, shape=(B,)).astype(jnp.int32)
    scale = (1.0 / keep_prob) if (scale_by_keep and keep_prob > 0.0) else 1.0

    # Lane-dense view: (B, R, 128). Copy-free when F % 128 == 0.
    F = x.size // B
    xf = x.reshape(B, F)
    F_pad = _round_up(F, _LANES)
    padded = F_pad != F
    if padded:
        # TODO(synk): a lane-masked-store path on a 2-D (B, F) layout would
        # avoid this pad copy; F % 128 == 0 already takes the copy-free path.
        xf = jnp.pad(xf, ((0, 0), (0, F_pad - F)))
    R = F_pad // _LANES
    x3 = xf.reshape(B, R, _LANES)

    # Block sizing: biggest sublane-aligned row count that stays within the
    # per-generation block-byte budget.
    block_bytes, vmem_limit = _pick_block_config()
    itemsize = jnp.dtype(dtype).itemsize
    sublanes = _sublanes_for(dtype)
    target_rows = max(sublanes,
                      (block_bytes // (_LANES * itemsize)) // sublanes * sublanes)
    if R <= target_rows:
        TR = R            # block == full sample slab (legal for any R: full dim)
        grid_r = 1
    else:
        TR = target_rows  # sublane-aligned; partial trailing block handled by Pallas
        grid_r = pl.cdiv(R, TR)

    kernel = functools.partial(_drop_path_kernel, scale=scale)

    grid_spec = pltpu.PrefetchScalarGridSpec(
        num_scalar_prefetch=1,
        grid=(B, grid_r),
        in_specs=[
            # Dropped samples (keep==0): every r-block maps to block 0, so the
            # resident block is reused and the remaining HBM reads are skipped.
            pl.BlockSpec((1, TR, _LANES),
                         lambda b, r, keep_ref: (b, r * keep_ref[b], 0)),
        ],
        out_specs=pl.BlockSpec((1, TR, _LANES),
                               lambda b, r, keep_ref: (b, r, 0)),
    )

    out = pl.pallas_call(
        kernel,
        out_shape=jax.ShapeDtypeStruct((B, R, _LANES), dtype),
        grid_spec=grid_spec,
        compiler_params=pltpu.CompilerParams(
            dimension_semantics=("parallel", "parallel"),
            vmem_limit_bytes=vmem_limit),
        input_output_aliases=({1: 0} if donate else {}),
    )(keep, x3)

    if padded:
        out = out.reshape(B, F_pad)[:, :F]
    return out.reshape(orig_shape)


class DropPath:
    """Mirror of the PyTorch module (no learnable parameters)."""

    def __init__(self, drop_prob: float = 0.0, scale_by_keep: bool = True):
        self.drop_prob = float(drop_prob)
        self.scale_by_keep = bool(scale_by_keep)
        self.training = True

    def __call__(self, x, key=None, donate: bool = False):
        return drop_path_pallas(x, self.drop_prob, self.training,
                                self.scale_by_keep, key=key, donate=donate)


if __name__ == "__main__":
    root = jax.random.PRNGKey(0)
    data_key, mask_key = jax.random.split(root)

    B, C, H, W = 2, 4, 16, 16
    x = jax.random.normal(data_key, (B, C, H, W), dtype=jnp.float32)

    drop_prob = 0.25
    keep_prob = 1.0 - drop_prob
    module = DropPath(drop_prob=drop_prob, scale_by_keep=True)

    ok = True

    # Training path (stochastic per-sample mask), F % 128 == 0 fast path.
    module.training = True
    y = jax.block_until_ready(module(x, key=mask_key))
    for b in range(B):
        yb = y[b]
        is_zero = bool(jnp.allclose(yb, 0.0, atol=1e-6))
        is_scaled = bool(jnp.allclose(yb, x[b] / keep_prob, atol=1e-5, rtol=1e-5))
        ok = ok and (is_zero or is_scaled)

    # Non-128-multiple feature count exercises the (minimal) padding path.
    x_odd = jax.random.normal(data_key, (2, 3, 5, 7), dtype=jnp.float32)
    y_odd = jax.block_until_ready(
        drop_path_pallas(x_odd, drop_prob, True, True, key=mask_key))
    for b in range(2):
        yb = y_odd[b]
        is_zero = bool(jnp.allclose(yb, 0.0, atol=1e-6))
        is_scaled = bool(jnp.allclose(yb, x_odd[b] / keep_prob, atol=1e-5, rtol=1e-5))
        ok = ok and (is_zero or is_scaled)

    # Eval path must be the identity.
    module.training = False
    y_eval = jax.block_until_ready(module(x))
    ok = ok and bool(jnp.allclose(y_eval, x))

    if ok:
        print("KERNEL_OK")
    else:
        raise SystemExit("DropPath Pallas kernel produced unexpected values")
</pallas_src>

<mosaic_0001>
module attributes {stable_mosaic.version = 11 : i64} {
  func.func @_drop_path_kernel(%arg0: i32, %arg1: i32, %arg2: memref<2xi32, #tpu.memory_space<smem>>, %arg3: memref<1x8x128xf32, #tpu.memory_space<vmem>>, %arg4: memref<1x8x128xf32, #tpu.memory_space<vmem>>) attributes {dimension_semantics = [#tpu.dimension_semantics<parallel>, #tpu.dimension_semantics<parallel>], iteration_bounds = array<i64: 2, 1>, scalar_prefetch = 1 : i64, scratch_operands = 0 : i64, tpu.core_type = #tpu.core_type<tc>, window_params = [{transform_indices = @transform_0, window_bounds = array<i64: 1, 8, 128>}, {transform_indices = @transform_1, window_bounds = array<i64: 1, 8, 128>}]} {
    %0 = arith.index_cast %arg0 : i32 to index
    %1 = memref.load %arg2[%0] : memref<2xi32, #tpu.memory_space<smem>>
    %c0_i32 = arith.constant 0 : i32
    %2 = arith.cmpi ne, %1, %c0_i32 : i32
    %3 = arith.extui %2 : i1 to i32
    %c0_i32_0 = arith.constant 0 : i32
    %4 = arith.cmpi ne, %3, %c0_i32_0 : i32
    scf.if %4 {
      %c0 = arith.constant 0 : index
      %c0_2 = arith.constant 0 : index
      %c0_3 = arith.constant 0 : index
      %8 = vector.load %arg3[%c0, %c0_2, %c0_3] : memref<1x8x128xf32, #tpu.memory_space<vmem>>, vector<1x8x128xf32>
      %cst = arith.constant 1.33333337 : f32
      %9 = vector.broadcast %cst : f32 to vector<1x8x128xf32>
      %10 = arith.mulf %8, %9 : vector<1x8x128xf32>
      %c0_4 = arith.constant 0 : index
      %c0_5 = arith.constant 0 : index
      %c0_6 = arith.constant 0 : index
      %11 = vector.load %arg4[%c0_4, %c0_5, %c0_6] : memref<1x8x128xf32, #tpu.memory_space<vmem>>, vector<1x8x128xf32>
      tpu.vector_store %arg4[%c0_4, %c0_5, %c0_6], %10 {strides = array<i32>} : memref<1x8x128xf32, #tpu.memory_space<vmem>>, vector<1x8x128xf32>,
    } else {
    }
    %true = arith.constant true
    %5 = arith.xori %2, %true : i1
    %6 = arith.extui %5 : i1 to i32
    %c0_i32_1 = arith.constant 0 : i32
    %7 = arith.cmpi ne, %6, %c0_i32_1 : i32
    scf.if %7 {
      %cst = arith.constant 0.000000e+00 : f32
      %8 = vector.broadcast %cst : f32 to vector<1x8x128xf32>
      %c0 = arith.constant 0 : index
      %c0_2 = arith.constant 0 : index
      %c0_3 = arith.constant 0 : index
      %9 = vector.load %arg4[%c0, %c0_2, %c0_3] : memref<1x8x128xf32, #tpu.memory_space<vmem>>, vector<1x8x128xf32>
      tpu.vector_store %arg4[%c0, %c0_2, %c0_3], %8 {strides = array<i32>} : memref<1x8x128xf32, #tpu.memory_space<vmem>>, vector<1x8x128xf32>,
    } else {
    }
    return
  }
  func.func @transform_0(%arg0: i32, %arg1: i32, %arg2: memref<2xi32, #tpu.memory_space<smem>>) -> (i32, i32, i32) {
    %0 = arith.index_cast %arg0 : i32 to index
    %1 = memref.load %arg2[%0] : memref<2xi32, #tpu.memory_space<smem>>
    %2 = arith.muli %arg1, %1 : i32
    %c0_i32 = arith.constant 0 : i32
    %c0_i32_0 = arith.constant 0 : i32
    return %arg0, %2, %c0_i32 : i32, i32, i32
  }
  func.func @transform_1(%arg0: i32, %arg1: i32, %arg2: memref<2xi32, #tpu.memory_space<smem>>) -> (i32, i32, i32) {
    %c0_i32 = arith.constant 0 : i32
    %c0_i32_0 = arith.constant 0 : i32
    return %arg0, %arg1, %c0_i32 : i32, i32, i32
  }
}

</mosaic_0001>

<llo_original>
// kernel: tpu_custom_call.1
$region0: #{tpu_custom_call.1}
  #allocation0 [shape = 'u32[]', space=smem, size = 0x4, offset = 0x4, fixed_abs, tag = 'smem constant byte address 0x4 - core index']
  #allocation1 [shape = 'u32[72,128]{1,0:T(1,128)}', space=vmem, size = 0x9000, scoped, tag = 'internal scratch']
  #allocation2 [shape = 's32[1]{0}', space=sflag, size = 0x4, scoped, tag = 'scoped memory for tpu_custom_call.1']
  #allocation3 [shape = 'u8[512]{0}', space=smem, size = 0x200, scoped, tag = 'prefetched SMEM operand 0']
  %s0 = inlined_call_operand.hbm [shape: s32[2], index: 0, kind: input, shape index: {}]
  %s1 = inlined_call_operand.hbm [shape: f32[2,8,128], index: 1, kind: input, shape index: {}]
  %s2 = inlined_call_operand.hbm [shape: f32[2,8,128], index: 2, kind: output, shape index: {}]
  %s3 = sld [smem:[#allocation0]]
  $region49: #{tpu_custom_call.1} parent=0
    _
  %s5 = ssub.s32 1, %s3
  %s6 = scalar_select 0, %s5, %s3
  %s8 = sshll.u32 %s0, 4
  %s9 = int_to_ptr.hbm [resolvable:$true] %s8
  %11 = dma.hbm_to_smem %s9, 16, [#allocation3], [#allocation2]
  %13 = dma.done [#allocation2], 16
  %14 = sfence
  $region1: #{tpu_custom_call.1} parent=0
    #allocation4 [shape = 'u8[8192]{0}', space=vmem, size = 0x2000, scoped, tag = 'input window, operand 1']
    #allocation5 [shape = 's32[2]{0}', space=sflag, size = 0x8, scoped, tag = 'scoped memory for tpu_custom_call.1']
    #allocation6 [shape = 's32[2]{0}', space=sflag, size = 0x8, scoped, tag = 'scoped memory for tpu_custom_call.1']
    #allocation7 [shape = 'u8[8192]{0}', space=vmem, size = 0x2000, scoped, tag = 'output window, operand 0']
    %15 = vsyncpa [#allocation5], 0
    %s16 = scalar_lea.sflag [#allocation5], 1
    %17 = vsyncpa %s16, 0
    %18 = vsyncpa [#allocation6], 0
    %s19 = scalar_lea.sflag [#allocation6], 1
    %20 = vsyncpa %s19, 0
    loop: start=0, step=1, limit=4
    $region2: #{tpu_custom_call.1} parent=1 // loop_pre_header
      _
    $region3: #{tpu_custom_call.1} parent=1 // loop_header
      %s22 = sphi 0, %s26
      %p23 = scmp.ge.s32.totalorder %s22, 4
      %s29 = sphi 0, %s41
      %s30 = sphi 0, %s37
      %s31 = sphi 0, %s29
      %s32 = sphi 0, %s30
      %s33 = sphi 0, %s31
      %s34 = sphi 0, %s32
      %s50 = sphi 0, %s52
      %s53 = sphi 0, %s50
      %s54 = sphi 0, %s53
      %s70 = sphi 0, %s54
      %s78 = sphi 0, %s80
      %s81 = sphi 0, %s78
      %s82 = sphi 0, %s81
      %s98 = sphi 0, %s82
    $region4: #{tpu_custom_call.1} parent=1 // loop_header_branch
      %25 = sbr.rel (%p23) target = $region8
    $region5: #{tpu_custom_call.1} parent=1 // loop_body
      %s27 = ssub.s32 %s22, 1
      %s28 = ssub.s32 %s22, 2
      %s35 = sadd.s32 1, %s30
      %p36 = scmp.ge.s32.totalorder %s35, 1
      %s37 = scalar_select %p36, 0, %s35
      %s38 = sadd.s32 1, %s29
      %s39 = scalar_select %p36, %s38, %s29
      %p40 = scmp.ge.s32.totalorder %s39, 2
      %s41 = scalar_select %p40, 0, %s39
      %s42 = sld [smem:[#allocation3 + %s29]]
      %s43 = smul.u32 %s30, %s42
      %s44 = sld [smem:[#allocation3 + %s41]]
      %s45 = smul.u32 %s37, %s44
      %s46 = ssub.s32 %s29, %s41
      %s47 = ssub.s32 %s43, %s45
      %s48 = sor.u32 %s46, %s47
      %p49 = scmp.eq.s32.totalorder %s48, 0
      %s51 = sadd.s32 %s50, 1
      %s52 = scalar_select %p49, %s50, %s51
      %p55 = pneg %p49
      %p56 = scmp.eq.s32.totalorder %s22, 1
      %p57 = por %p55, %p56
      %p58 = scmp.ne.s32.totalorder %s50, %s53
      %p59 = scmp.eq.s32.totalorder %s22, 0
      %p60 = por %p58, %p59
      %p61 = scmp.ne.s32.totalorder %s50, %s53
      %p62 = scmp.eq.s32.totalorder %s27, 1
      %p63 = por %p61, %p62
      %p64 = scmp.ne.s32.totalorder %s53, %s54
      %p65 = scmp.eq.s32.totalorder %s27, 0
      %p66 = por %p64, %p65
      %p67 = scmp.ne.s32.totalorder %s53, %s54
      %p68 = scmp.eq.s32.totalorder %s28, 1
      %p69 = por %p67, %p68
      %p71 = scmp.ne.s32.totalorder %s54, %s70
      %p72 = scmp.eq.s32.totalorder %s28, 0
      %p73 = por %p71, %p72
      %s74 = ssub.s32 %s29, %s41
      %s75 = ssub.s32 %s30, %s37
      %s76 = sor.u32 %s74, %s75
      %p77 = scmp.eq.s32.totalorder %s76, 0
      %s79 = sadd.s32 %s78, 1
      %s80 = scalar_select %p77, %s78, %s79
      %p83 = pneg %p77
      %p84 = scmp.eq.s32.totalorder %s22, 1
      %p85 = por %p83, %p84
      %p86 = scmp.ne.s32.totalorder %s78, %s81
      %p87 = scmp.eq.s32.totalorder %s22, 0
      %p88 = por %p86, %p87
      %p89 = scmp.ne.s32.totalorder %s78, %s81
      %p90 = scmp.eq.s32.totalorder %s27, 1
      %p91 = por %p89, %p90
      %p92 = scmp.ne.s32.totalorder %s81, %s82
      %p93 = scmp.eq.s32.totalorder %s27, 0
      %p94 = por %p92, %p93
      %p95 = scmp.ne.s32.totalorder %s81, %s82
      %p96 = scmp.eq.s32.totalorder %s28, 1
      %p97 = por %p95, %p96
      %p99 = scmp.ne.s32.totalorder %s82, %s98
      %p100 = scmp.eq.s32.totalorder %s28, 0
      %p101 = por %p99, %p100
      %p102 = scmp.le.s32.totalorder 1, %s22
      %p103 = scmp.lt.s32.totalorder %s22, 3
      %p104 = pnand %p102, %p103
      %p105 = pneg %p104
      // Predicated region
      $region9: #{tpu_custom_call.1} parent=5 // pred_check
        _
      $region10: #{tpu_custom_call.1} parent=5 // pred_check_branch
        %107 = sbr.rel (%p104) target = $region12
      $region11: #{tpu_custom_call.1} parent=5 // pred_region
        %s108 = ssub.s32 %s22, 1
      $region12: #{tpu_custom_call.1} parent=5 // pred_fallthru
        _
      %p109 = scmp.lt.s32.totalorder %s22, 2
      // Predicated region
      $region13: #{tpu_custom_call.1} parent=5 // pred_check
        %p110 = pneg %p109
      $region14: #{tpu_custom_call.1} parent=5 // pred_check_branch
        %112 = sbr.rel (%p110) target = $region16
      $region15: #{tpu_custom_call.1} parent=5 // pred_region
        // Predicated region
        $region17: #{tpu_custom_call.1} parent=15 // pred_check
          %p113 = pneg %p60
        $region18: #{tpu_custom_call.1} parent=15 // pred_check_branch
          %115 = sbr.rel (%p113) target = $region20
        $region19: #{tpu_custom_call.1} parent=15 // pred_region
          %s116 = sand.u32 %s50, 1
          %s117 = scalar_lea.sflag [#allocation5], %s116
          %s118 = sand.u32 %s50, 1
          %s119 = smul.addr %s118, 8
          %s120 = scalar_lea.vmem [#allocation4], %s119
          %s121 = sld [smem:[#allocation3 + %s29]]
          %s122 = smul.u32 %s30, %s121
          %124 = vsyncadd %s117, 0
          %s125 = sadd.s32 %s122, %s29
          %s126 = smul.addr %s125, 8
          %s127 = scalar_lea.hbm %s1, %s126
          %s129 = sshll.u32 %s127, 4
          %s130 = int_to_ptr.hbm [resolvable:$true] %s129
          %s131 = sshll.u32 %s120, 4
          %s132 = int_to_ptr.vmem [resolvable:$true] %s131
          %134 = dma.hbm_to_vmem [thread:$0]  %s130, 128, %s132, %s117
        $region20: #{tpu_custom_call.1} parent=15 // pred_fallthru
          _
      $region16: #{tpu_custom_call.1} parent=5 // pred_fallthru
        _
      %p135 = scmp.le.s32.totalorder 1, %s22
      %p136 = scmp.lt.s32.totalorder %s22, 3
      %p137 = pnand %p135, %p136
      %p138 = pneg %p137
      // Predicated region
      $region21: #{tpu_custom_call.1} parent=5 // pred_check
        _
      $region22: #{tpu_custom_call.1} parent=5 // pred_check_branch
        %140 = sbr.rel (%p137) target = $region24
      $region23: #{tpu_custom_call.1} parent=5 // pred_region
        %s141 = ssub.s32 %s22, 1
        %s142 = sand.u32 %s53, 1
        %s143 = scalar_lea.sflag [#allocation5], %s142
        %s144 = sand.u32 %s53, 1
        %s145 = smul.addr %s144, 8
        %s146 = scalar_lea.vmem [#allocation4], %s145
        // Predicated region
        $region25: #{tpu_custom_call.1} parent=23 // pred_check
          %p147 = pneg %p66
        $region26: #{tpu_custom_call.1} parent=23 // pred_check_branch
          %149 = sbr.rel (%p147) target = $region28
        $region27: #{tpu_custom_call.1} parent=23 // pred_region
          %151 = dma.done %s143, 128
        $region28: #{tpu_custom_call.1} parent=23 // pred_fallthru
          _
        %s152 = sand.u32 %s53, 1
        %s153 = scalar_lea.sflag [#allocation5], %s152
        %s154 = sand.u32 %s53, 1
        %s155 = smul.addr %s154, 8
        %s156 = scalar_lea.vmem [#allocation4], %s155
        %p157 = pneg %p66
        %p158 = pneg %p63
        %p159 = pneg %p94
        %p160 = pneg %p91
        %s161 = sand.u32 %s81, 1
        %s162 = scalar_lea.sflag [#allocation6], %s161
        %s163 = sand.u32 %s81, 1
        %s164 = smul.addr %s163, 8
        %s165 = scalar_lea.vmem [#allocation7], %s164
        %s166 = sld [smem:[#allocation3 + %s31]]
        %s167 = smul.u32 %s32, %s166
        %s168 = sld [smem:[#allocation3 + %s31]]
        %p169 = scmp.ne.s32.totalorder %s168, 0
        // Predicated region
        $region29: #{tpu_custom_call.1} parent=23 // pred_check
          %p170 = pneg %p169
        $region30: #{tpu_custom_call.1} parent=23 // pred_check_branch
          %172 = sbr.rel (%p170) target = $region32
        $region31: #{tpu_custom_call.1} parent=23 // pred_region
          %v173 = vld [vmem:[%s146] sm:$0xff]
          %v174 = vmul.f32 %v173, 1.3333334
          %175 = vst [vmem:[%s165] sm:$0xff] %v174
        $region32: #{tpu_custom_call.1} parent=23 // pred_fallthru
          _
        %p176 = scmp.eq.s32.totalorder %s168, 0
        // Predicated region
        $region33: #{tpu_custom_call.1} parent=23 // pred_check
          %p177 = pneg %p176
        $region34: #{tpu_custom_call.1} parent=23 // pred_check_branch
          %179 = sbr.rel (%p177) target = $region36
        $region35: #{tpu_custom_call.1} parent=23 // pred_region
          %180 = vst [vmem:[%s165] sm:$0xff] 0.0
        $region36: #{tpu_custom_call.1} parent=23 // pred_fallthru
          _
        %s181 = sand.u32 %s81, 1
        %s182 = scalar_lea.sflag [#allocation6], %s181
        %s183 = sand.u32 %s81, 1
        %s184 = smul.addr %s183, 8
        %s185 = scalar_lea.vmem [#allocation7], %s184
        // Predicated region
        $region37: #{tpu_custom_call.1} parent=23 // pred_check
          %p186 = pneg %p91
        $region38: #{tpu_custom_call.1} parent=23 // pred_check_branch
          %188 = sbr.rel (%p186) target = $region40
        $region39: #{tpu_custom_call.1} parent=23 // pred_region
          %190 = vsyncadd %s182, 0
          %s191 = sadd.s32 %s32, %s31
          %s192 = smul.addr %s191, 8
          %s193 = scalar_lea.hbm %s2, %s192
          %s195 = sshll.u32 %s185, 4
          %s196 = int_to_ptr.vmem [resolvable:$true] %s195
          %s197 = sshll.u32 %s193, 4
          %s198 = int_to_ptr.hbm [resolvable:$true] %s197
          %200 = dma.vmem_to_hbm [thread:$0]  %s196, 128, %s198, %s182
        $region40: #{tpu_custom_call.1} parent=23 // pred_fallthru
          _
      $region24: #{tpu_custom_call.1} parent=5 // pred_fallthru
        _
      %p201 = scmp.le.s32.totalorder 2, %s22
      // Predicated region
      $region41: #{tpu_custom_call.1} parent=5 // pred_check
        %p202 = pneg %p201
      $region42: #{tpu_custom_call.1} parent=5 // pred_check_branch
        %204 = sbr.rel (%p202) target = $region44
      $region43: #{tpu_custom_call.1} parent=5 // pred_region
        %s205 = ssub.s32 %s22, 2
        // Predicated region
        $region45: #{tpu_custom_call.1} parent=43 // pred_check
          %p206 = pneg %p97
        $region46: #{tpu_custom_call.1} parent=43 // pred_check_branch
          %208 = sbr.rel (%p206) target = $region48
        $region47: #{tpu_custom_call.1} parent=43 // pred_region
          %s209 = sand.u32 %s82, 1
          %s210 = scalar_lea.sflag [#allocation6], %s209
          %s211 = sand.u32 %s82, 1
          %s212 = smul.addr %s211, 8
          %s213 = scalar_lea.vmem [#allocation7], %s212
          %215 = dma.done %s210, 128
        $region48: #{tpu_custom_call.1} parent=43 // pred_fallthru
          _
      $region44: #{tpu_custom_call.1} parent=5 // pred_fallthru
        _
    $region6: #{tpu_custom_call.1} parent=1 // loop_footer
      %s26 = sadd.s32 1, %s22
    $region7: #{tpu_custom_call.1} parent=1 // loop_footer_branch
      %21 = sbr.rel target = $region3
    $region8: #{tpu_custom_call.1} parent=1 // loop_exit
      _
    %216 = vsyncpa [#allocation5], 1
    %s217 = scalar_lea.sflag [#allocation5], 1
    %218 = vsyncpa %s217, 1
    %219 = vsyncpa [#allocation6], 1
    %s220 = scalar_lea.sflag [#allocation6], 1
    %221 = vsyncpa %s220, 1

</llo_original>
